<compile_context>
chip_gen: v7x
topology: tpu7x:2x2x1
jax: 0.10.0
libtpu: 0.0.40
codegen_flags: <defaults>
</compile_context>

<pallas_src>
import functools

import jax
import jax.numpy as jnp
from jax import lax
from jax.experimental import pallas as pl
from jax.experimental.pallas import tpu as pltpu


# ------------------------------ tiling policy --------------------------------

_VMEM_TILE_BUDGET = 34 * 1024 * 1024   # pipeline-buffer budget, safe on v5e/v6e/v7x
_VMEM_LIMIT_BYTES = 48 * 1024 * 1024   # > v5e/v6e scoped defaults, < v7x 64 MiB physical


def _round_up(x, m):
    return (x + m - 1) // m * m


def _choose_tiling(K, Dh, R, w_bytes, budget=_VMEM_TILE_BUDGET):
    """Largest K-tile (multiple of 128) whose double-buffered weight+x slabs fit
    `budget`, plus the padded K (multiple of the tile).  Fewer, bigger grid steps
    amortise the ~0.35 us/step pipeline overhead on every generation."""
    fixed = R * Dh * 4 + 4 * Dh * 4 + (2 << 20)      # f32 acc + scale/bias + upcast temps/slack
    per_k = 2 * Dh * w_bytes + 2 * R * 2             # dbl-buffered weight row + bf16 x row
    tk_cap = max(128, (budget - fixed) // per_k // 128 * 128)
    k128 = _round_up(K, 128)
    if k128 <= tk_cap:
        return k128, k128
    nsteps = -(-k128 // tk_cap)
    while True:
        tk = _round_up(-(-k128 // nsteps), 128)
        if tk <= tk_cap:
            return tk, nsteps * tk
        nsteps += 1


def _pick_inner_chunk(tk, ck_max=1024):
    """Largest divisor of tk that is a multiple of 128 and <= ck_max: the K
    sub-chunk dequantized (int8 -> bf16) per inner-loop step, so the upcast temp
    stays ~1 MiB while the grid-level DMA keeps the big tile."""
    m = tk // 128
    for d in range(min(ck_max // 128, m), 0, -1):
        if m % d == 0:
            return 128 * d
    return 128


# ------------------------------ fused kernel ---------------------------------

def _clip_feats_kernel(x_ref, w_ref, scale_ref, b_ref, dot_ref, nrm_ref, acc_ref, *, ck):
    """One (D-half, K-tile) grid step.

    x_ref    : [R, tk]   bf16   rows 0..R-2 sketches, row R-1 target
    w_ref    : [tk, Dh]  int8   per-output-column-quantized projection weight
    scale_ref: [1, Dh]   f32    dequantization scale
    b_ref    : [1, Dh]   f32    CLIP Normalize folded into a bias
    dot_ref  : [1, R, 1] f32    partial <f_r, f_target> for this D-half
    nrm_ref  : [1, R, 1] f32    partial |f_r|^2 for this D-half
    acc_ref  : [R, Dh]   f32    VMEM accumulator across the K grid axis
    """
    k = pl.program_id(1)

    @pl.when(k == 0)
    def _init():
        acc_ref[...] = jnp.zeros_like(acc_ref)

    n_chunks = w_ref.shape[0] // ck          # tk is a multiple of ck by construction

    def body(i, acc):
        off = pl.multiple_of(i * ck, 128)
        # int8 -> f32 -> bf16 on the VPU, chunk-wise so the upcast temp stays
        # small; the whole dequant + matmul hides under the next weight DMA.
        w_c = w_ref[pl.ds(off, ck), :].astype(jnp.float32).astype(jnp.bfloat16)
        x_c = x_ref[:, pl.ds(off, ck)]
        return acc + jnp.dot(x_c, w_c, preferred_element_type=jnp.float32)

    acc_ref[...] += lax.fori_loop(0, n_chunks, body, jnp.zeros_like(acc_ref))

    @pl.when(k == pl.num_programs(1) - 1)
    def _finalize():
        feats = acc_ref[...] * scale_ref[...] + b_ref[...]       # dequant + bias, [R, Dh] f32
        t = feats[-1:, :]                                        # target row (detached upstream;
        #                                                          value-neutral in this forward)
        dot_ref[...] = jnp.sum(feats * t, axis=1, keepdims=True)[None, :, :]
        nrm_ref[...] = jnp.sum(feats * feats, axis=1, keepdims=True)[None, :, :]


def clip_feature_partials(x, w_q, scale, bias, *, tk):
    """x: [R, K_pad] bf16, w_q: [S, K_pad, Dh] int8, scale/bias: [S, 1, Dh] f32
    -> (dot, nrm2), each [S, R, 1] f32 (partial reductions per D-half)."""
    R, K_pad = x.shape
    S, Kw, Dh = w_q.shape
    assert Kw == K_pad and K_pad % tk == 0
    nsteps = K_pad // tk
    ck = _pick_inner_chunk(tk)
    kernel = functools.partial(_clip_feats_kernel, ck=ck)

    part_spec = pl.BlockSpec((1, R, 1), lambda c, k: (c, 0, 0))
    return pl.pallas_call(
        kernel,
        out_shape=(jax.ShapeDtypeStruct((S, R, 1), jnp.float32),
                   jax.ShapeDtypeStruct((S, R, 1), jnp.float32)),
        grid_spec=pltpu.PrefetchScalarGridSpec(
            num_scalar_prefetch=0,
            grid=(S, nsteps),                                        # (D-half, K-tile)
            in_specs=[
                pl.BlockSpec((R, tk), lambda c, k: (0, k)),          # stacked images
                pl.BlockSpec((None, tk, Dh), lambda c, k: (c, k, 0)),  # int8 weight half
                pl.BlockSpec((None, 1, Dh), lambda c, k: (c, 0, 0)),   # dequant scale
                pl.BlockSpec((None, 1, Dh), lambda c, k: (c, 0, 0)),   # folded-Normalize bias
            ],
            out_specs=(part_spec, part_spec),
            scratch_shapes=[pltpu.VMEM((R, Dh), jnp.float32)],
        ),
        compiler_params=pltpu.CompilerParams(
            dimension_semantics=("parallel", "arbitrary"),   # D-halves feed both v7x cores; K reduces
            vmem_limit_bytes=_VMEM_LIMIT_BYTES),
    )(x, w_q, scale, bias)


def _combine_partials(dot, nrm2):
    """Sum the D-halves and finish sum_i (1 - cos); ~20 flops in plain XLA."""
    dot_t = jnp.sum(dot[:, :, 0], axis=0)     # [R]  <f_r, f_target>
    self2 = jnp.sum(nrm2[:, :, 0], axis=0)    # [R]  |f_r|^2
    eps2 = jnp.float32(1e-16)                 # torch.cosine_similarity eps=1e-8 on the norms
    cos = (dot_t[:-1]
           * lax.rsqrt(jnp.maximum(self2[:-1], eps2))
           * lax.rsqrt(jnp.maximum(self2[-1], eps2)))
    return jnp.sum(1.0 - cos)


# ------------------------------ CLIPLoss module ------------------------------

CLIP_MEAN = jnp.array([0.48145466, 0.4578275, 0.40821073], dtype=jnp.float32)
CLIP_STD = jnp.array([0.26862954, 0.26130258, 0.27577711], dtype=jnp.float32)


class CLIPLoss:
    """Mirrors painter.dream3dvg.loss.main.CLIPLoss.forward.

    # TODO(synk): the pretrained CLIP ViT-B/32 visual encoder cannot be loaded
    # here; encode_image is a deterministic synthetic linear projection.  The
    # CLIP Normalize preprocess is folded algebraically into that projection's
    # weight and bias (value-equivalent), so no per-call normalize op is needed.
    """

    def __init__(self, key, c, h, w, fc_dim=512, num_augs=4, affine=True):
        assert c == 3, "CLIP normalize constants are per-RGB-channel"
        # TODO(synk): `affine` selects kornia augmentations, which have no Pallas equivalent.
        in_dim = c * h * w
        init_scale = 1.0 / jnp.sqrt(jnp.float32(in_dim))
        w_f32 = jax.random.normal(key, (in_dim, fc_dim), jnp.float32) * init_scale

        # Fold Normalize into the linear projection (one-time, outside kernels):
        #   ((x - m)/s) @ W  ==  x @ (W * (1/s)_per_row)  +  (-(m/s) @ W)
        inv_std = jnp.repeat(1.0 / CLIP_STD, h * w)                    # [in_dim]
        neg_mean_over_std = jnp.repeat(-CLIP_MEAN / CLIP_STD, h * w)   # [in_dim]
        w_eff = w_f32 * inv_std[:, None]                               # [K, D] f32
        bias = neg_mean_over_std[None, :] @ w_f32                      # [1, D] f32

        # Symmetric per-output-column int8 quantization of the streamed weight:
        # halves HBM weight bytes (the only real bottleneck) on every generation.
        col_amax = jnp.max(jnp.abs(w_eff), axis=0, keepdims=True)      # [1, D]
        col_scale = jnp.maximum(col_amax, 1e-12) / 127.0               # [1, D] f32
        w_q2d = jnp.clip(jnp.round(w_eff / col_scale), -127, 127).astype(jnp.int8)

        # Split D into halves so the leading "parallel" grid axis can feed both
        # v7x TensorCores (harmless two half-width passes on 1-TC chips).
        n_split = 2 if fc_dim % 256 == 0 else 1
        dh = fc_dim // n_split

        # K tiling: biggest tile that fits the cross-generation VMEM budget, then
        # zero-pad K to a multiple of the tile (no divisor requirement / OOM fallback).
        r_max = num_augs + 1
        self.tk, self.K_pad = _choose_tiling(in_dim, dh, r_max, w_bytes=1)
        if self.K_pad > in_dim:
            w_q2d = jnp.pad(w_q2d, ((0, self.K_pad - in_dim), (0, 0)))

        # [n_split, K_pad, Dh] so each D-half is a contiguous, lane-dense HBM slab.
        self.w_q = jnp.transpose(w_q2d.reshape(self.K_pad, n_split, dh), (1, 0, 2))
        self.scale = jnp.transpose(col_scale.reshape(1, n_split, dh), (1, 0, 2))
        self.bias = jnp.transpose(bias.reshape(1, n_split, dh), (1, 0, 2))

        self.num_augs = num_augs
        self.in_dim = in_dim
        # kept only for the in-script reference checks
        self._w_f32 = w_f32
        self._w_deq = w_q2d[:in_dim].astype(jnp.float32) * col_scale
        self._bias2d = bias

    def __call__(self, sketch, target, train=True):
        B, C, H, W = sketch.shape
        assert B == 1, "CLIPLoss.forward expects [1, C, H, W]"
        s_flat = sketch.reshape(1, -1)
        t_flat = target.reshape(1, -1)

        if train:
            # TODO(synk): the kornia random affine/perspective augmentations have
            # no Pallas equivalent; identity "augmentations" stand in.  The
            # num_augs sketch copies + target are batched into ONE MXU problem and
            # the per-aug cosine distances are summed after the kernel.
            s_rows = jnp.broadcast_to(s_flat, (self.num_augs, s_flat.shape[1]))
            x = jnp.concatenate([s_rows, t_flat], axis=0)
        else:
            # target features are .detach()'d in the original; value-neutral for
            # this forward pass (no autodiff through the fused kernel here).
            x = jnp.concatenate([s_flat, t_flat], axis=0)

        if self.K_pad > self.in_dim:            # zero-pad K (value-neutral for the dot products)
            x = jnp.pad(x, ((0, 0), (0, self.K_pad - self.in_dim)))
        x = x.astype(jnp.bfloat16)              # single cast where the stacked operand is formed

        dot, nrm2 = clip_feature_partials(x, self.w_q, self.scale, self.bias, tk=self.tk)
        return _combine_partials(dot, nrm2)


# ------------------------- pure-JAX references (test) ------------------------

def _cos_distance(s, t):
    eps = jnp.float32(1e-8)
    num = jnp.sum(s * t, axis=1)
    den = (jnp.maximum(jnp.linalg.norm(s, axis=1), eps)
           * jnp.maximum(jnp.linalg.norm(t, axis=1), eps))
    return jnp.mean(1.0 - num / den)


def _reference_eval_loss_f32(sketch, target, w_f32):
    """Un-quantized f32 reference: Normalize -> linear encode -> cos distance."""
    mean = CLIP_MEAN.reshape(1, -1, 1, 1)
    std = CLIP_STD.reshape(1, -1, 1, 1)

    def enc(img):
        z = ((img - mean) / std).reshape(img.shape[0], -1)
        return z @ w_f32

    return _cos_distance(enc(sketch), enc(jax.lax.stop_gradient(target)))


def _reference_eval_loss_deq(sketch, target, w_deq, bias):
    """Same math as the kernel (dequantized int8 weight + folded bias), all f32."""
    def enc(img):
        return img.reshape(img.shape[0], -1) @ w_deq + bias

    return _cos_distance(enc(sketch), enc(target))


# ----------------------------------- main ------------------------------------

if __name__ == "__main__":
    key = jax.random.PRNGKey(0)
    k_sketch, k_target, k_w = jax.random.split(key, 3)

    B, C, H, W = 1, 3, 16, 16          # [1, C, H, W] as in the module docstring
    sketch = jax.random.uniform(k_sketch, (B, C, H, W), jnp.float32)
    target = jax.random.uniform(k_target, (B, C, H, W), jnp.float32)

    loss_mod = CLIPLoss(k_w, C, H, W, fc_dim=512, num_augs=4)

    eval_loss = loss_mod(sketch, target, train=False)    # eval path (single cos distance)
    train_loss = loss_mod(sketch, target, train=True)    # train path (sum over num_augs)
    jax.block_until_ready((eval_loss, train_loss))

    assert eval_loss.shape == () and jnp.isfinite(eval_loss)
    assert train_loss.shape == () and jnp.isfinite(train_loss)

    # Tight check vs a reference that uses the SAME quantized weight (isolates the
    # Pallas kernel; remaining error is the bf16 image cast feeding the MXU).
    ref_q = _reference_eval_loss_deq(sketch, target, loss_mod._w_deq, loss_mod._bias2d)
    assert abs(float(eval_loss) - float(ref_q)) < 2e-2, (float(eval_loss), float(ref_q))
    assert abs(float(train_loss) - loss_mod.num_augs * float(ref_q)) < 8e-2, (
        float(train_loss), float(ref_q))

    # Loose check vs the un-quantized f32 reference (bf16 + int8 quantization error).
    ref_f32 = _reference_eval_loss_f32(sketch, target, loss_mod._w_f32)
    assert abs(float(eval_loss) - float(ref_f32)) < 5e-2, (float(eval_loss), float(ref_f32))

    print("KERNEL_OK")
</pallas_src>

<mosaic_0001>
module attributes {stable_mosaic.version = 11 : i64} {
  func.func @_clip_feats_kernel(%arg0: i32, %arg1: i32, %arg2: memref<2x768xbf16, #tpu.memory_space<vmem>>, %arg3: memref<1x768x256xi8, #tpu.memory_space<vmem>>, %arg4: memref<1x1x256xf32, #tpu.memory_space<vmem>>, %arg5: memref<1x1x256xf32, #tpu.memory_space<vmem>>, %arg6: memref<1x2x1xf32, #tpu.memory_space<vmem>>, %arg7: memref<1x2x1xf32, #tpu.memory_space<vmem>>, %arg8: memref<2x256xf32, #tpu.memory_space<vmem>>) attributes {dimension_semantics = [#tpu.dimension_semantics<parallel>, #tpu.dimension_semantics<arbitrary>], iteration_bounds = array<i64: 2, 1>, scalar_prefetch = 0 : i64, scratch_operands = 1 : i64, tpu.core_type = #tpu.core_type<tc>, window_params = [{transform_indices = @transform_0, window_bounds = array<i64: 2, 768>}, {transform_indices = @transform_1, window_bounds = array<i64: 1, 768, 256>}, {transform_indices = @transform_2, window_bounds = array<i64: 1, 1, 256>}, {transform_indices = @transform_3, window_bounds = array<i64: 1, 1, 256>}, {transform_indices = @transform_4, window_bounds = array<i64: 1, 2, 1>}, {transform_indices = @transform_5, window_bounds = array<i64: 1, 2, 1>}]} {
    %c0_i32 = arith.constant 0 : i32
    %0 = arith.cmpi eq, %arg1, %c0_i32 : i32
    %1 = arith.extui %0 : i1 to i32
    %c0_i32_0 = arith.constant 0 : i32
    %2 = arith.cmpi ne, %1, %c0_i32_0 : i32
    scf.if %2 {
      %cst_11 = arith.constant 0.000000e+00 : f32
      %21 = vector.broadcast %cst_11 : f32 to vector<2x256xf32>
      %c0_12 = arith.constant 0 : index
      %c0_13 = arith.constant 0 : index
      %22 = vector.load %arg8[%c0_12, %c0_13] : memref<2x256xf32, #tpu.memory_space<vmem>>, vector<2x256xf32>
      tpu.vector_store %arg8[%c0_12, %c0_13], %21 {strides = array<i32>} : memref<2x256xf32, #tpu.memory_space<vmem>>, vector<2x256xf32>,
    } else {
    }
    %c0 = arith.constant 0 : index
    %c0_1 = arith.constant 0 : index
    %3 = vector.load %arg8[%c0, %c0_1] : memref<2x256xf32, #tpu.memory_space<vmem>>, vector<2x256xf32>
    %cst = arith.constant 0.000000e+00 : f32
    %4 = vector.broadcast %cst : f32 to vector<2x256xf32>
    %c0_i32_2 = arith.constant 0 : i32
    %c768_i32 = arith.constant 768 : i32
    %5 = arith.muli %c0_i32_2, %c768_i32 : i32
    %6 = tpu.assume_multiple %5, 128 : i32
    %c0_3 = arith.constant 0 : index
    %7 = arith.index_cast %6 : i32 to index
    %c0_4 = arith.constant 0 : index
    %8 = vector.load %arg3[%c0_3, %7, %c0_4] : memref<1x768x256xi8, #tpu.memory_space<vmem>>, vector<1x768x256xi8>
    %9 = vector.shape_cast %8 : vector<1x768x256xi8> to vector<768x256xi8>
    %10 = arith.sitofp %9 : vector<768x256xi8> to vector<768x256xf32>
    %11 = arith.truncf %10 : vector<768x256xf32> to vector<768x256xbf16>
    %c0_5 = arith.constant 0 : index
    %12 = arith.index_cast %6 : i32 to index
    %13 = vector.load %arg2[%c0_5, %12] : memref<2x768xbf16, #tpu.memory_space<vmem>>, vector<2x768xbf16>
    %cst_6 = arith.constant dense<0.000000e+00> : vector<2x256xf32>
    %14 = tpu.matmul %13, %11, %cst_6 {dimension_numbers = #tpu.dot_dimension_numbers<[1], [0], [0], [1], [0, 0, 1, 1], [], []>} : vector<2x768xbf16>, vector<768x256xbf16>, vector<2x256xf32> -> vector<2x256xf32>
    %15 = arith.addf %4, %14 : vector<2x256xf32>
    %c1_i32 = arith.constant 1 : i32
    %16 = arith.addf %3, %15 : vector<2x256xf32>
    %c0_7 = arith.constant 0 : index
    %c0_8 = arith.constant 0 : index
    %17 = vector.load %arg8[%c0_7, %c0_8] : memref<2x256xf32, #tpu.memory_space<vmem>>, vector<2x256xf32>
    tpu.vector_store %arg8[%c0_7, %c0_8], %16 {strides = array<i32>} : memref<2x256xf32, #tpu.memory_space<vmem>>, vector<2x256xf32>,
    %c0_i32_9 = arith.constant 0 : i32
    %18 = arith.cmpi eq, %arg1, %c0_i32_9 : i32
    %19 = arith.extui %18 : i1 to i32
    %c0_i32_10 = arith.constant 0 : i32
    %20 = arith.cmpi ne, %19, %c0_i32_10 : i32
    scf.if %20 {
      %c0_11 = arith.constant 0 : index
      %c0_12 = arith.constant 0 : index
      %21 = vector.load %arg8[%c0_11, %c0_12] : memref<2x256xf32, #tpu.memory_space<vmem>>, vector<2x256xf32>
      %c0_13 = arith.constant 0 : index
      %c0_14 = arith.constant 0 : index
      %c0_15 = arith.constant 0 : index
      %22 = vector.load %arg4[%c0_13, %c0_14, %c0_15] : memref<1x1x256xf32, #tpu.memory_space<vmem>>, vector<1x1x256xf32>
      %23 = vector.shape_cast %22 : vector<1x1x256xf32> to vector<1x256xf32>
      %24 = vector.broadcast %23 : vector<1x256xf32> to vector<2x256xf32>
      %25 = arith.mulf %21, %24 : vector<2x256xf32>
      %c0_16 = arith.constant 0 : index
      %c0_17 = arith.constant 0 : index
      %c0_18 = arith.constant 0 : index
      %26 = vector.load %arg5[%c0_16, %c0_17, %c0_18] : memref<1x1x256xf32, #tpu.memory_space<vmem>>, vector<1x1x256xf32>
      %27 = vector.shape_cast %26 : vector<1x1x256xf32> to vector<1x256xf32>
      %28 = vector.broadcast %27 : vector<1x256xf32> to vector<2x256xf32>
      %29 = arith.addf %25, %28 : vector<2x256xf32>
      %30 = vector.extract_strided_slice %29 {offsets = [1, 0], sizes = [1, 256], strides = [1, 1]} : vector<2x256xf32> to vector<1x256xf32>
      %31 = vector.broadcast %30 : vector<1x256xf32> to vector<2x256xf32>
      %32 = arith.mulf %29, %31 : vector<2x256xf32>
      %cst_19 = arith.constant dense<0.000000e+00> : vector<2xf32>
      %33 = vector.multi_reduction <add>, %32, %cst_19 [1] : vector<2x256xf32> to vector<2xf32>
      %34 = vector.shape_cast %33 : vector<2xf32> to vector<2x1xf32>
      %35 = vector.shape_cast %34 : vector<2x1xf32> to vector<1x2x1xf32>
      %c0_20 = arith.constant 0 : index
      %c0_21 = arith.constant 0 : index
      %c0_22 = arith.constant 0 : index
      %36 = vector.load %arg6[%c0_20, %c0_21, %c0_22] : memref<1x2x1xf32, #tpu.memory_space<vmem>>, vector<1x2x1xf32>
      tpu.vector_store %arg6[%c0_20, %c0_21, %c0_22], %35 {strides = array<i32>} : memref<1x2x1xf32, #tpu.memory_space<vmem>>, vector<1x2x1xf32>,
      %37 = arith.mulf %29, %29 : vector<2x256xf32>
      %cst_23 = arith.constant dense<0.000000e+00> : vector<2xf32>
      %38 = vector.multi_reduction <add>, %37, %cst_23 [1] : vector<2x256xf32> to vector<2xf32>
      %39 = vector.shape_cast %38 : vector<2xf32> to vector<2x1xf32>
      %40 = vector.shape_cast %39 : vector<2x1xf32> to vector<1x2x1xf32>
      %c0_24 = arith.constant 0 : index
      %c0_25 = arith.constant 0 : index
      %c0_26 = arith.constant 0 : index
      %41 = vector.load %arg7[%c0_24, %c0_25, %c0_26] : memref<1x2x1xf32, #tpu.memory_space<vmem>>, vector<1x2x1xf32>
      tpu.vector_store %arg7[%c0_24, %c0_25, %c0_26], %40 {strides = array<i32>} : memref<1x2x1xf32, #tpu.memory_space<vmem>>, vector<1x2x1xf32>,
    } else {
    }
    return
  }
  func.func @transform_0(%arg0: i32, %arg1: i32) -> (i32, i32) {
    %c0_i32 = arith.constant 0 : i32
    %c0_i32_0 = arith.constant 0 : i32
    return %c0_i32, %arg1 : i32, i32
  }
  func.func @transform_1(%arg0: i32, %arg1: i32) -> (i32, i32, i32) {
    %c0_i32 = arith.constant 0 : i32
    %c0_i32_0 = arith.constant 0 : i32
    return %arg0, %arg1, %c0_i32 : i32, i32, i32
  }
  func.func @transform_2(%arg0: i32, %arg1: i32) -> (i32, i32, i32) {
    %c0_i32 = arith.constant 0 : i32
    %c0_i32_0 = arith.constant 0 : i32
    %c0_i32_1 = arith.constant 0 : i32
    return %arg0, %c0_i32, %c0_i32_0 : i32, i32, i32
  }
  func.func @transform_3(%arg0: i32, %arg1: i32) -> (i32, i32, i32) {
    %c0_i32 = arith.constant 0 : i32
    %c0_i32_0 = arith.constant 0 : i32
    %c0_i32_1 = arith.constant 0 : i32
    return %arg0, %c0_i32, %c0_i32_0 : i32, i32, i32
  }
  func.func @transform_4(%arg0: i32, %arg1: i32) -> (i32, i32, i32) {
    %c0_i32 = arith.constant 0 : i32
    %c0_i32_0 = arith.constant 0 : i32
    %c0_i32_1 = arith.constant 0 : i32
    return %arg0, %c0_i32, %c0_i32_0 : i32, i32, i32
  }
  func.func @transform_5(%arg0: i32, %arg1: i32) -> (i32, i32, i32) {
    %c0_i32 = arith.constant 0 : i32
    %c0_i32_0 = arith.constant 0 : i32
    %c0_i32_1 = arith.constant 0 : i32
    return %arg0, %c0_i32, %c0_i32_0 : i32, i32, i32
  }
}

</mosaic_0001>

<llo_original>
// kernel: tpu_custom_call.1
$region0: #{tpu_custom_call.1}
  #allocation0 [shape = 'u32[]', space=smem, size = 0x4, offset = 0x4, fixed_abs, tag = 'smem constant byte address 0x4 - core index']
  #allocation1 [shape = 'u32[144,128]{1,0:T(1,128)}', space=vmem, size = 0x12000, scoped, tag = 'internal scratch']
  #allocation2 [shape = 'f32[2,256]{1,0:T(2,128)}', space=vmem, size = 0x800, scoped, tag = 'scratch operand']
  %s0 = inlined_call_operand.hbm [shape: bf16[2,768], index: 0, kind: input, shape index: {}]
  %s1 = inlined_call_operand.hbm [shape: s8[2,768,256], index: 1, kind: input, shape index: {}]
  %s2 = inlined_call_operand.vmem [shape: f32[2,1,256], index: 2, kind: input, shape index: {}]
  %s3 = inlined_call_operand.vmem [shape: f32[2,1,256], index: 3, kind: input, shape index: {}]
  %s4 = inlined_call_operand.vmem [shape: f32[2,2,1], index: 4, kind: output, shape index: {0}]
  %s5 = inlined_call_operand.vmem [shape: f32[2,2,1], index: 5, kind: output, shape index: {1}]
  %6 = xla_tuple %s4, %s5
  %s7 = sld [smem:[#allocation0]]
  $region73: #{tpu_custom_call.1} parent=0
    _
  %s9 = ssub.s32 1, %s7
  %s10 = scalar_select 0, %s9, %s7
  $region1: #{tpu_custom_call.1} parent=0
    #allocation3 [shape = 'u8[3072]{0}', space=vmem, size = 0xc00, scoped, tag = 'input window, operand 0, single buffered']
    #allocation4 [shape = 's32[2]{0}', space=sflag, size = 0x8, scoped, tag = 'scoped memory for tpu_custom_call.1']
    #allocation5 [shape = 'u8[393216]{0}', space=vmem, size = 0x60000, scoped, tag = 'input window, operand 1']
    #allocation6 [shape = 's32[2]{0}', space=sflag, size = 0x8, scoped, tag = 'scoped memory for tpu_custom_call.1']
    %11 = vsyncpa [#allocation4], 0
    %12 = vsyncpa [#allocation6], 0
    %s13 = scalar_lea.sflag [#allocation6], 1
    %14 = vsyncpa %s13, 0
    loop: start=0, step=1, limit=4
    $region2: #{tpu_custom_call.1} parent=1 // loop_pre_header
      _
    $region3: #{tpu_custom_call.1} parent=1 // loop_header
      %s16 = sphi 0, %s20
      %p17 = scmp.ge.s32.totalorder %s16, 4
      %s23 = sphi 0, %s35
      %s24 = sphi 0, %s31
      %s25 = sphi 0, %s23
      %s26 = sphi 0, %s24
      %s27 = sphi 0, %s25
      %s28 = sphi 0, %s26
      %s38 = sphi 0, %s40
      %s41 = sphi 0, %s38
      %s42 = sphi 0, %s41
      %s58 = sphi 0, %s42
      %s66 = sphi 0, %s68
      %s69 = sphi 0, %s66
      %s70 = sphi 0, %s69
      %s86 = sphi 0, %s70
      %s92 = sphi 0, %s94
      %s95 = sphi 0, %s92
      %s96 = sphi 0, %s95
      %s112 = sphi 0, %s96
      %s118 = sphi 0, %s120
      %s121 = sphi 0, %s118
      %s122 = sphi 0, %s121
      %s138 = sphi 0, %s122
      %s144 = sphi 0, %s146
      %s147 = sphi 0, %s144
      %s148 = sphi 0, %s147
      %s164 = sphi 0, %s148
      %s170 = sphi 0, %s172
      %s173 = sphi 0, %s170
      %s174 = sphi 0, %s173
      %s190 = sphi 0, %s174
    $region4: #{tpu_custom_call.1} parent=1 // loop_header_branch
      %19 = sbr.rel (%p17) target = $region8
    $region5: #{tpu_custom_call.1} parent=1 // loop_body
      %s21 = ssub.s32 %s16, 1
      %s22 = ssub.s32 %s16, 2
      %s29 = sadd.s32 1, %s24
      %p30 = scmp.ge.s32.totalorder %s29, 1
      %s31 = scalar_select %p30, 0, %s29
      %s32 = sadd.s32 1, %s23
      %s33 = scalar_select %p30, %s32, %s23
      %p34 = scmp.ge.s32.totalorder %s33, 2
      %s35 = scalar_select %p34, 0, %s33
      %s36 = ssub.s32 %s24, %s31
      %p37 = scmp.eq.s32.totalorder %s36, 0
      %s39 = sadd.s32 %s38, 1
      %s40 = scalar_select %p37, %s38, %s39
      %p43 = pneg %p37
      %p44 = scmp.eq.s32.totalorder %s16, 1
      %p45 = por %p43, %p44
      %p46 = scmp.ne.s32.totalorder %s38, %s41
      %p47 = scmp.eq.s32.totalorder %s16, 0
      %p48 = por %p46, %p47
      %p49 = scmp.ne.s32.totalorder %s38, %s41
      %p50 = scmp.eq.s32.totalorder %s21, 1
      %p51 = por %p49, %p50
      %p52 = scmp.ne.s32.totalorder %s41, %s42
      %p53 = scmp.eq.s32.totalorder %s21, 0
      %p54 = por %p52, %p53
      %p55 = scmp.ne.s32.totalorder %s41, %s42
      %p56 = scmp.eq.s32.totalorder %s22, 1
      %p57 = por %p55, %p56
      %p59 = scmp.ne.s32.totalorder %s42, %s58
      %p60 = scmp.eq.s32.totalorder %s22, 0
      %p61 = por %p59, %p60
      %s62 = ssub.s32 %s23, %s35
      %s63 = ssub.s32 %s24, %s31
      %s64 = sor.u32 %s62, %s63
      %p65 = scmp.eq.s32.totalorder %s64, 0
      %s67 = sadd.s32 %s66, 1
      %s68 = scalar_select %p65, %s66, %s67
      %p71 = pneg %p65
      %p72 = scmp.eq.s32.totalorder %s16, 1
      %p73 = por %p71, %p72
      %p74 = scmp.ne.s32.totalorder %s66, %s69
      %p75 = scmp.eq.s32.totalorder %s16, 0
      %p76 = por %p74, %p75
      %p77 = scmp.ne.s32.totalorder %s66, %s69
      %p78 = scmp.eq.s32.totalorder %s21, 1
      %p79 = por %p77, %p78
      %p80 = scmp.ne.s32.totalorder %s69, %s70
      %p81 = scmp.eq.s32.totalorder %s21, 0
      %p82 = por %p80, %p81
      %p83 = scmp.ne.s32.totalorder %s69, %s70
      %p84 = scmp.eq.s32.totalorder %s22, 1
      %p85 = por %p83, %p84
      %p87 = scmp.ne.s32.totalorder %s70, %s86
      %p88 = scmp.eq.s32.totalorder %s22, 0
      %p89 = por %p87, %p88
      %s90 = ssub.s32 %s23, %s35
      %p91 = scmp.eq.s32.totalorder %s90, 0
      %s93 = sadd.s32 %s92, 1
      %s94 = scalar_select %p91, %s92, %s93
      %p97 = pneg %p91
      %p98 = scmp.eq.s32.totalorder %s16, 1
      %p99 = por %p97, %p98
      %p100 = scmp.ne.s32.totalorder %s92, %s95
      %p101 = scmp.eq.s32.totalorder %s16, 0
      %p102 = por %p100, %p101
      %p103 = scmp.ne.s32.totalorder %s92, %s95
      %p104 = scmp.eq.s32.totalorder %s21, 1
      %p105 = por %p103, %p104
      %p106 = scmp.ne.s32.totalorder %s95, %s96
      %p107 = scmp.eq.s32.totalorder %s21, 0
      %p108 = por %p106, %p107
      %p109 = scmp.ne.s32.totalorder %s95, %s96
      %p110 = scmp.eq.s32.totalorder %s22, 1
      %p111 = por %p109, %p110
      %p113 = scmp.ne.s32.totalorder %s96, %s112
      %p114 = scmp.eq.s32.totalorder %s22, 0
      %p115 = por %p113, %p114
      %s116 = ssub.s32 %s23, %s35
      %p117 = scmp.eq.s32.totalorder %s116, 0
      %s119 = sadd.s32 %s118, 1
      %s120 = scalar_select %p117, %s118, %s119
      %p123 = pneg %p117
      %p124 = scmp.eq.s32.totalorder %s16, 1
      %p125 = por %p123, %p124
      %p126 = scmp.ne.s32.totalorder %s118, %s121
      %p127 = scmp.eq.s32.totalorder %s16, 0
      %p128 = por %p126, %p127
      %p129 = scmp.ne.s32.totalorder %s118, %s121
      %p130 = scmp.eq.s32.totalorder %s21, 1
      %p131 = por %p129, %p130
      %p132 = scmp.ne.s32.totalorder %s121, %s122
      %p133 = scmp.eq.s32.totalorder %s21, 0
      %p134 = por %p132, %p133
      %p135 = scmp.ne.s32.totalorder %s121, %s122
      %p136 = scmp.eq.s32.totalorder %s22, 1
      %p137 = por %p135, %p136
      %p139 = scmp.ne.s32.totalorder %s122, %s138
      %p140 = scmp.eq.s32.totalorder %s22, 0
      %p141 = por %p139, %p140
      %s142 = ssub.s32 %s23, %s35
      %p143 = scmp.eq.s32.totalorder %s142, 0
      %s145 = sadd.s32 %s144, 1
      %s146 = scalar_select %p143, %s144, %s145
      %p149 = pneg %p143
      %p150 = scmp.eq.s32.totalorder %s16, 1
      %p151 = por %p149, %p150
      %p152 = scmp.ne.s32.totalorder %s144, %s147
      %p153 = scmp.eq.s32.totalorder %s16, 0
      %p154 = por %p152, %p153
      %p155 = scmp.ne.s32.totalorder %s144, %s147
      %p156 = scmp.eq.s32.totalorder %s21, 1
      %p157 = por %p155, %p156
      %p158 = scmp.ne.s32.totalorder %s147, %s148
      %p159 = scmp.eq.s32.totalorder %s21, 0
      %p160 = por %p158, %p159
      %p161 = scmp.ne.s32.totalorder %s147, %s148
      %p162 = scmp.eq.s32.totalorder %s22, 1
      %p163 = por %p161, %p162
      %p165 = scmp.ne.s32.totalorder %s148, %s164
      %p166 = scmp.eq.s32.totalorder %s22, 0
      %p167 = por %p165, %p166
      %s168 = ssub.s32 %s23, %s35
      %p169 = scmp.eq.s32.totalorder %s168, 0
      %s171 = sadd.s32 %s170, 1
      %s172 = scalar_select %p169, %s170, %s171
      %p175 = pneg %p169
      %p176 = scmp.eq.s32.totalorder %s16, 1
      %p177 = por %p175, %p176
      %p178 = scmp.ne.s32.totalorder %s170, %s173
      %p179 = scmp.eq.s32.totalorder %s16, 0
      %p180 = por %p178, %p179
      %p181 = scmp.ne.s32.totalorder %s170, %s173
      %p182 = scmp.eq.s32.totalorder %s21, 1
      %p183 = por %p181, %p182
      %p184 = scmp.ne.s32.totalorder %s173, %s174
      %p185 = scmp.eq.s32.totalorder %s21, 0
      %p186 = por %p184, %p185
      %p187 = scmp.ne.s32.totalorder %s173, %s174
      %p188 = scmp.eq.s32.totalorder %s22, 1
      %p189 = por %p187, %p188
      %p191 = scmp.ne.s32.totalorder %s174, %s190
      %p192 = scmp.eq.s32.totalorder %s22, 0
      %p193 = por %p191, %p192
      %p194 = scmp.le.s32.totalorder 1, %s16
      %p195 = scmp.lt.s32.totalorder %s16, 3
      %p196 = pnand %p194, %p195
      %p197 = pneg %p196
      // Predicated region
      $region9: #{tpu_custom_call.1} parent=5 // pred_check
        _
      $region10: #{tpu_custom_call.1} parent=5 // pred_check_branch
        %199 = sbr.rel (%p196) target = $region12
      $region11: #{tpu_custom_call.1} parent=5 // pred_region
        %s200 = ssub.s32 %s16, 1
        // Predicated region
        $region13: #{tpu_custom_call.1} parent=11 // pred_check
          %p201 = pneg %p54
        $region14: #{tpu_custom_call.1} parent=11 // pred_check_branch
          %203 = sbr.rel (%p201) target = $region16
        $region15: #{tpu_custom_call.1} parent=11 // pred_region
          %s204 = smul.u32 6, %s26
          %s206 = ssub.s32 96, 96
          %207 = vsyncadd [#allocation4], %s206
          %s208 = smul.addr %s204, 16
          %s209 = scalar_lea.hbm %s0, %s208
          %s211 = sshll.u32 [#allocation3], 4
          %s212 = int_to_ptr.vmem [resolvable:$true] %s211
          %214 = dma.hbm_to_vmem [thread:$0]  %s209, 96, %s212, [#allocation4]
        $region16: #{tpu_custom_call.1} parent=11 // pred_fallthru
          _
      $region12: #{tpu_custom_call.1} parent=5 // pred_fallthru
        _
      %p215 = scmp.lt.s32.totalorder %s16, 2
      // Predicated region
      $region17: #{tpu_custom_call.1} parent=5 // pred_check
        %p216 = pneg %p215
      $region18: #{tpu_custom_call.1} parent=5 // pred_check_branch
        %218 = sbr.rel (%p216) target = $region20
      $region19: #{tpu_custom_call.1} parent=5 // pred_region
        // Predicated region
        $region21: #{tpu_custom_call.1} parent=19 // pred_check
          %p219 = pneg %p76
        $region22: #{tpu_custom_call.1} parent=19 // pred_check_branch
          %221 = sbr.rel (%p219) target = $region24
        $region23: #{tpu_custom_call.1} parent=19 // pred_region
          %s222 = sand.u32 %s66, 1
          %s223 = scalar_lea.sflag [#allocation6], %s222
          %s224 = sand.u32 %s66, 1
          %s225 = smul.addr %s224, 384
          %s226 = scalar_lea.vmem [#allocation5], %s225
          %s227 = smul.u32 24, %s24
          %s229 = ssub.s32 6144, 6144
          %230 = vsyncadd %s223, %s229
          %s231 = smul.addr %s227, 2
          %s232 = smul.addr %s23, 48
          %s233 = sadd.s32 %s231, %s232
          %s234 = smul.addr %s233, 128
          %s235 = scalar_lea.hbm %s1, %s234
          %s236 = sshll.u32 %s226, 4
          %s237 = int_to_ptr.vmem [resolvable:$true] %s236
          %242 = dma.hbm_to_vmem [thread:$0]  %s235, 6144, %s237, %s223, 256, 256, 16
        $region24: #{tpu_custom_call.1} parent=19 // pred_fallthru
          _
        // Predicated region
        $region25: #{tpu_custom_call.1} parent=19 // pred_check
          %p243 = pneg %p102
        $region26: #{tpu_custom_call.1} parent=19 // pred_check_branch
          %245 = sbr.rel (%p243) target = $region28
        $region27: #{tpu_custom_call.1} parent=19 // pred_region
          %p246 = scmp.lt.s32.totalorder %s23, 1
          %s247 = scalar_select %p246, %s23, 1
          %s248 = smul.addr %s247, 2
          %s249 = scalar_lea.vmem %s2, %s248
        $region28: #{tpu_custom_call.1} parent=19 // pred_fallthru
          _
        // Predicated region
        $region29: #{tpu_custom_call.1} parent=19 // pred_check
          %p250 = pneg %p128
        $region30: #{tpu_custom_call.1} parent=19 // pred_check_branch
          %252 = sbr.rel (%p250) target = $region32
        $region31: #{tpu_custom_call.1} parent=19 // pred_region
          %p253 = scmp.lt.s32.totalorder %s23, 1
          %s254 = scalar_select %p253, %s23, 1
          %s255 = smul.addr %s254, 2
          %s256 = scalar_lea.vmem %s3, %s255
        $region32: #{tpu_custom_call.1} parent=19 // pred_fallthru
          _
      $region20: #{tpu_custom_call.1} parent=5 // pred_fallthru
        _
      %p257 = scmp.le.s32.totalorder 1, %s16
      %p258 = scmp.lt.s32.totalorder %s16, 3
      %p259 = pnand %p257, %p258
      %p260 = pneg %p259
      // Predicated region
      $region33: #{tpu_custom_call.1} parent=5 // pred_check
        _
      $region34: #{tpu_custom_call.1} parent=5 // pred_check_branch
        %262 = sbr.rel (%p259) target = $region36
      $region35: #{tpu_custom_call.1} parent=5 // pred_region
        %s263 = ssub.s32 %s16, 1
        // Predicated region
        $region37: #{tpu_custom_call.1} parent=35 // pred_check
          %p264 = pneg %p54
        $region38: #{tpu_custom_call.1} parent=35 // pred_check_branch
          %266 = sbr.rel (%p264) target = $region40
        $region39: #{tpu_custom_call.1} parent=35 // pred_region
          %267 = dma.done [#allocation4], 96
        $region40: #{tpu_custom_call.1} parent=35 // pred_fallthru
          _
        %s268 = sand.u32 %s69, 1
        %s269 = scalar_lea.sflag [#allocation6], %s268
        %s270 = sand.u32 %s69, 1
        %s271 = smul.addr %s270, 384
        %s272 = scalar_lea.vmem [#allocation5], %s271
        // Predicated region
        $region41: #{tpu_custom_call.1} parent=35 // pred_check
          %p273 = pneg %p82
        $region42: #{tpu_custom_call.1} parent=35 // pred_check_branch
          %275 = sbr.rel (%p273) target = $region44
        $region43: #{tpu_custom_call.1} parent=35 // pred_region
          %276 = dma.done %s269, 6144
        $region44: #{tpu_custom_call.1} parent=35 // pred_fallthru
          _
        %p277 = pneg %p54
        %p278 = pneg %p51
        %s279 = sand.u32 %s69, 1
        %s280 = scalar_lea.sflag [#allocation6], %s279
        %s281 = sand.u32 %s69, 1
        %s282 = smul.addr %s281, 384
        %s283 = scalar_lea.vmem [#allocation5], %s282
        %p284 = pneg %p82
        %p285 = pneg %p79
        %p286 = scmp.lt.s32.totalorder %s25, 1
        %s287 = scalar_select %p286, %s25, 1
        %s288 = smul.addr %s287, 2
        %s289 = scalar_lea.vmem %s2, %s288
        %p290 = pneg %p108
        %p291 = pneg %p105
        %p292 = scmp.lt.s32.totalorder %s25, 1
        %s293 = scalar_select %p292, %s25, 1
        %s294 = smul.addr %s293, 2
        %s295 = scalar_lea.vmem %s3, %s294
        %p296 = pneg %p134
        %p297 = pneg %p131
        %p298 = pneg %p160
        %p299 = pneg %p157
        %p300 = scmp.lt.s32.totalorder %s25, 1
        %s301 = scalar_select %p300, %s25, 1
        %s302 = smul.addr %s301, 2
        %s303 = scalar_lea.vmem %s4, %s302
        %p304 = pneg %p186
        %p305 = pneg %p183
        %p306 = scmp.lt.s32.totalorder %s25, 1
        %s307 = scalar_select %p306, %s25, 1
        %s308 = smul.addr %s307, 2
        %s309 = scalar_lea.vmem %s5, %s308
        %s310 = smul.u32 6, %s26
        %s311 = smul.u32 24, %s26
        %p312 = scmp.lt.s32.totalorder %s25, 1
        %s313 = scalar_select %p312, %s25, 1
        %s314 = smul.addr %s313, 2
        %s315 = scalar_lea.vmem %s2, %s314
        %p316 = scmp.lt.s32.totalorder %s25, 1
        %s317 = scalar_select %p316, %s25, 1
        %s318 = smul.addr %s317, 2
        %s319 = scalar_lea.vmem %s3, %s318
        %p320 = scmp.lt.s32.totalorder %s25, 1
        %s321 = scalar_select %p320, %s25, 1
        %s322 = smul.addr %s321, 2
        %s323 = scalar_lea.vmem %s4, %s322
        %p324 = scmp.lt.s32.totalorder %s25, 1
        %s325 = scalar_select %p324, %s25, 1
        %s326 = smul.addr %s325, 2
        %s327 = scalar_lea.vmem %s5, %s326
        %p328 = scmp.eq.s32.totalorder %s26, 0
        // Predicated region
        $region45: #{tpu_custom_call.1} parent=35 // pred_check
          %p329 = pneg %p328
        $region46: #{tpu_custom_call.1} parent=35 // pred_check_branch
          %331 = sbr.rel (%p329) target = $region48
        $region47: #{tpu_custom_call.1} parent=35 // pred_region
          %332 = vst [vmem:[#allocation2] sm:$0xf] 0.0
        $region48: #{tpu_custom_call.1} parent=35 // pred_fallthru
          _
        %v333 = vld [vmem:[#allocation2] sm:$0xf]
        %s334 = smul.u32 0, 2
        %s335 = smul.addr %s334, 8
        %s336 = scalar_lea.vmem %s272, %s335 [#allocation5]
        %v337 = vld [vmem:[%s336] sm:$0xff]
        %v338 = vld [vmem:[%s336 + $0x8] sm:$0xff]
        %v339 = vld [vmem:[%s336 + $0x10] sm:$0xff]
        %v340 = vld [vmem:[%s336 + $0x18] sm:$0xff]
        %v341 = vld [vmem:[%s336 + $0x20] sm:$0xff]
        %v342 = vld [vmem:[%s336 + $0x28] sm:$0xff]
        %v343 = vld [vmem:[%s336 + $0x30] sm:$0xff]
        %v344 = vld [vmem:[%s336 + $0x38] sm:$0xff]
        %v345 = vld [vmem:[%s336 + $0x40] sm:$0xff]
        %v346 = vld [vmem:[%s336 + $0x48] sm:$0xff]
        %v347 = vld [vmem:[%s336 + $0x50] sm:$0xff]
        %v348 = vld [vmem:[%s336 + $0x58] sm:$0xff]
        %v349 = vld [vmem:[%s336 + $0x60] sm:$0xff]
        %v350 = vld [vmem:[%s336 + $0x68] sm:$0xff]
        %v351 = vld [vmem:[%s336 + $0x70] sm:$0xff]
        %v352 = vld [vmem:[%s336 + $0x78] sm:$0xff]
        %v353 = vld [vmem:[%s336 + $0x80] sm:$0xff]
        %v354 = vld [vmem:[%s336 + $0x88] sm:$0xff]
        %v355 = vld [vmem:[%s336 + $0x90] sm:$0xff]
        %v356 = vld [vmem:[%s336 + $0x98] sm:$0xff]
        %v357 = vld [vmem:[%s336 + $0xa0] sm:$0xff]
        %v358 = vld [vmem:[%s336 + $0xa8] sm:$0xff]
        %v359 = vld [vmem:[%s336 + $0xb0] sm:$0xff]
        %v360 = vld [vmem:[%s336 + $0xb8] sm:$0xff]
        %v361 = vld [vmem:[%s336 + $0xc0] sm:$0xff]
        %v362 = vld [vmem:[%s336 + $0xc8] sm:$0xff]
        %v363 = vld [vmem:[%s336 + $0xd0] sm:$0xff]
        %v364 = vld [vmem:[%s336 + $0xd8] sm:$0xff]
        %v365 = vld [vmem:[%s336 + $0xe0] sm:$0xff]
        %v366 = vld [vmem:[%s336 + $0xe8] sm:$0xff]
        %v367 = vld [vmem:[%s336 + $0xf0] sm:$0xff]
        %v368 = vld [vmem:[%s336 + $0xf8] sm:$0xff]
        %v369 = vld [vmem:[%s336 + $0x100] sm:$0xff]
        %v370 = vld [vmem:[%s336 + $0x108] sm:$0xff]
        %v371 = vld [vmem:[%s336 + $0x110] sm:$0xff]
        %v372 = vld [vmem:[%s336 + $0x118] sm:$0xff]
        %v373 = vld [vmem:[%s336 + $0x120] sm:$0xff]
        %v374 = vld [vmem:[%s336 + $0x128] sm:$0xff]
        %v375 = vld [vmem:[%s336 + $0x130] sm:$0xff]
        %v376 = vld [vmem:[%s336 + $0x138] sm:$0xff]
        %v377 = vld [vmem:[%s336 + $0x140] sm:$0xff]
        %v378 = vld [vmem:[%s336 + $0x148] sm:$0xff]
        %v379 = vld [vmem:[%s336 + $0x150] sm:$0xff]
        %v380 = vld [vmem:[%s336 + $0x158] sm:$0xff]
        %v381 = vld [vmem:[%s336 + $0x160] sm:$0xff]
        %v382 = vld [vmem:[%s336 + $0x168] sm:$0xff]
        %v383 = vld [vmem:[%s336 + $0x170] sm:$0xff]
        %v384 = vld [vmem:[%s336 + $0x178] sm:$0xff]
        %v385 = vunpack.c.l.s8.bf16 %v337
        %v386 = vunpack.c.l.s8.bf16 %v338
        %v387 = vunpack.c.h.s8.bf16 %v337
        %v388 = vunpack.c.h.s8.bf16 %v338
        %v389 = vunpack.c.l.s8.bf16 %v339
        %v390 = vunpack.c.l.s8.bf16 %v340
        %v391 = vunpack.c.h.s8.bf16 %v339
        %v392 = vunpack.c.h.s8.bf16 %v340
        %v393 = vunpack.c.l.s8.bf16 %v341
        %v394 = vunpack.c.l.s8.bf16 %v342
        %v395 = vunpack.c.h.s8.bf16 %v341
        %v396 = vunpack.c.h.s8.bf16 %v342
        %v397 = vunpack.c.l.s8.bf16 %v343
        %v398 = vunpack.c.l.s8.bf16 %v344
        %v399 = vunpack.c.h.s8.bf16 %v343
        %v400 = vunpack.c.h.s8.bf16 %v344
        %v401 = vunpack.c.l.s8.bf16 %v345
        %v402 = vunpack.c.l.s8.bf16 %v346
        %v403 = vunpack.c.h.s8.bf16 %v345
        %v404 = vunpack.c.h.s8.bf16 %v346
        %v405 = vunpack.c.l.s8.bf16 %v347
        %v406 = vunpack.c.l.s8.bf16 %v348
        %v407 = vunpack.c.h.s8.bf16 %v347
        %v408 = vunpack.c.h.s8.bf16 %v348
        %v409 = vunpack.c.l.s8.bf16 %v349
        %v410 = vunpack.c.l.s8.bf16 %v350
        %v411 = vunpack.c.h.s8.bf16 %v349
        %v412 = vunpack.c.h.s8.bf16 %v350
        %v413 = vunpack.c.l.s8.bf16 %v351
        %v414 = vunpack.c.l.s8.bf16 %v352
        %v415 = vunpack.c.h.s8.bf16 %v351
        %v416 = vunpack.c.h.s8.bf16 %v352
        %v417 = vunpack.c.l.s8.bf16 %v353
        %v418 = vunpack.c.l.s8.bf16 %v354
        %v419 = vunpack.c.h.s8.bf16 %v353
        %v420 = vunpack.c.h.s8.bf16 %v354
        %v421 = vunpack.c.l.s8.bf16 %v355
        %v422 = vunpack.c.l.s8.bf16 %v356
        %v423 = vunpack.c.h.s8.bf16 %v355
        %v424 = vunpack.c.h.s8.bf16 %v356
        %v425 = vunpack.c.l.s8.bf16 %v357
        %v426 = vunpack.c.l.s8.bf16 %v358
        %v427 = vunpack.c.h.s8.bf16 %v357
        %v428 = vunpack.c.h.s8.bf16 %v358
        %v429 = vunpack.c.l.s8.bf16 %v359
        %v430 = vunpack.c.l.s8.bf16 %v360
        %v431 = vunpack.c.h.s8.bf16 %v359
        %v432 = vunpack.c.h.s8.bf16 %v360
        %v433 = vunpack.c.l.s8.bf16 %v361
        %v434 = vunpack.c.l.s8.bf16 %v362
        %v435 = vunpack.c.h.s8.bf16 %v361
        %v436 = vunpack.c.h.s8.bf16 %v362
        %v437 = vunpack.c.l.s8.bf16 %v363
        %v438 = vunpack.c.l.s8.bf16 %v364
        %v439 = vunpack.c.h.s8.bf16 %v363
        %v440 = vunpack.c.h.s8.bf16 %v364
        %v441 = vunpack.c.l.s8.bf16 %v365
        %v442 = vunpack.c.l.s8.bf16 %v366
        %v443 = vunpack.c.h.s8.bf16 %v365
        %v444 = vunpack.c.h.s8.bf16 %v366
        %v445 = vunpack.c.l.s8.bf16 %v367
        %v446 = vunpack.c.l.s8.bf16 %v368
        %v447 = vunpack.c.h.s8.bf16 %v367
        %v448 = vunpack.c.h.s8.bf16 %v368
        %v449 = vunpack.c.l.s8.bf16 %v369
        %v450 = vunpack.c.l.s8.bf16 %v370
        %v451 = vunpack.c.h.s8.bf16 %v369
        %v452 = vunpack.c.h.s8.bf16 %v370
        %v453 = vunpack.c.l.s8.bf16 %v371
        %v454 = vunpack.c.l.s8.bf16 %v372
        %v455 = vunpack.c.h.s8.bf16 %v371
        %v456 = vunpack.c.h.s8.bf16 %v372
        %v457 = vunpack.c.l.s8.bf16 %v373
        %v458 = vunpack.c.l.s8.bf16 %v374
        %v459 = vunpack.c.h.s8.bf16 %v373
        %v460 = vunpack.c.h.s8.bf16 %v374
        %v461 = vunpack.c.l.s8.bf16 %v375
        %v462 = vunpack.c.l.s8.bf16 %v376
        %v463 = vunpack.c.h.s8.bf16 %v375
        %v464 = vunpack.c.h.s8.bf16 %v376
        %v465 = vunpack.c.l.s8.bf16 %v377
        %v466 = vunpack.c.l.s8.bf16 %v378
        %v467 = vunpack.c.h.s8.bf16 %v377
        %v468 = vunpack.c.h.s8.bf16 %v378
        %v469 = vunpack.c.l.s8.bf16 %v379
        %v470 = vunpack.c.l.s8.bf16 %v380
        %v471 = vunpack.c.h.s8.bf16 %v379
        %v472 = vunpack.c.h.s8.bf16 %v380
        %v473 = vunpack.c.l.s8.bf16 %v381
        %v474 = vunpack.c.l.s8.bf16 %v382
        %v475 = vunpack.c.h.s8.bf16 %v381
        %v476 = vunpack.c.h.s8.bf16 %v382
        %v477 = vunpack.c.l.s8.bf16 %v383
        %v478 = vunpack.c.l.s8.bf16 %v384
        %v479 = vunpack.c.h.s8.bf16 %v383
        %v480 = vunpack.c.h.s8.bf16 %v384
        %v481 = vld [vmem:[#allocation3] sm:$0x3f]
        %v483 = vcombine.high %v481, %v481
        %v485 = vunpack.c.l.s4 1966171168
        %v486 = vunpack.c.0.s8 %v485
        %v487 = vlaneseq
        %v488 = vshrl.u32 %v487, 7
        %v489 = vsub.s32 %v486, %v488
        %v490 = vrot.slane %v481, %v489
        %v492 = vunpack.c.l.s4 1966171168
        %v493 = vunpack.c.0.s8 %v492
        %v494 = vlaneseq
        %v495 = vshrl.u32 %v494, 7
        %v496 = vsub.s32 %v493, %v495
        %v497 = vrot.slane %v483, %v496
        %v498 = vcombine.high %v490, %v490
        %v499 = vcombine.high %v497, %v497
        %v501 = vunpack.c.l.s4 1966171168
        %v502 = vunpack.c.0.s8 %v501
        %v503 = vlaneseq
        %v504 = vshrl.u32 %v503, 7
        %v505 = vsub.s32 %v502, %v504
        %v506 = vrot.slane %v490, %v505
        %v508 = vunpack.c.l.s4 1966171168
        %v509 = vunpack.c.0.s8 %v508
        %v510 = vlaneseq
        %v511 = vshrl.u32 %v510, 7
        %v512 = vsub.s32 %v509, %v511
        %v513 = vrot.slane %v497, %v512
        %v515 = vunpack.c.l.s4 1966171168
        %v516 = vunpack.c.0.s8 %v515
        %v517 = vlaneseq
        %v518 = vshrl.u32 %v517, 7
        %v519 = vsub.s32 %v516, %v518
        %v520 = vrot.slane %v498, %v519
        %v522 = vunpack.c.l.s4 1966171168
        %v523 = vunpack.c.0.s8 %v522
        %v524 = vlaneseq
        %v525 = vshrl.u32 %v524, 7
        %v526 = vsub.s32 %v523, %v525
        %v527 = vrot.slane %v499, %v526
        %v528 = vcombine.high %v506, %v506
        %v529 = vcombine.high %v520, %v520
        %536 = vmatprep.subr.bf16.mxu0 %v386
        %537 = vmatpush1.bf16.msra.mxu0 %v385
        %538 = vmatprep.subr.bf16.mxu0 %v388
        %539 = vmatpush1.bf16.msra.mxu0 %v387
        %540 = vmatprep.subr.bf16.mxu0 %v390
        %541 = vmatpush1.bf16.msra.mxu0 %v389
        %542 = vmatprep.subr.bf16.mxu0 %v392
        %543 = vmatpush1.bf16.msra.mxu0 %v391
        %544 = vmatprep.subr.bf16.mxu0 %v394
        %545 = vmatpush1.bf16.msra.mxu0 %v393
        %546 = vmatprep.subr.bf16.mxu0 %v396
        %547 = vmatpush1.bf16.msra.mxu0 %v395
        %548 = vmatprep.subr.bf16.mxu0 %v398
        %549 = vmatpush1.bf16.msra.mxu0 %v397
        %550 = vmatprep.subr.bf16.mxu0 %v400
        %551 = vmatpush1.bf16.msra.mxu0 %v399
        %552 = vmatprep.subr.bf16.mxu0 %v402
        %553 = vmatpush1.bf16.msra.mxu0 %v401
        %554 = vmatprep.subr.bf16.mxu0 %v404
        %555 = vmatpush1.bf16.msra.mxu0 %v403
        %556 = vmatprep.subr.bf16.mxu0 %v406
        %557 = vmatpush1.bf16.msra.mxu0 %v405
        %558 = vmatprep.subr.bf16.mxu0 %v408
        %559 = vmatpush1.bf16.msra.mxu0 %v407
        %560 = vmatprep.subr.bf16.mxu0 %v410
        %561 = vmatpush1.bf16.msra.mxu0 %v409
        %562 = vmatprep.subr.bf16.mxu0 %v412
        %563 = vmatpush1.bf16.msra.mxu0 %v411
        %564 = vmatprep.subr.bf16.mxu0 %v414
        %565 = vmatpush1.bf16.msra.mxu0 %v413
        %566 = vmatprep.subr.bf16.mxu0 %v416
        %567 = vmatpush1.bf16.msra.mxu0 %v415
        %568 = vmatprep.mubr.bf16.mxu0 %v520
        %569 = vmatmul.mubr.bf16.gmra.mrb[0].mxu0 %v506
        %v570 = vpop.f32.mrb[0].mxu0
        %v571 = vadd.f32 0.0, %v570
        %v572 = vpop.f32.mrb[0].mxu0
        %v573 = vadd.f32 0.0, %v572
        %v574 = vpop.f32.mrb[0].mxu0
        %v575 = vpop.f32.mrb[0].mxu0
        %576 = vdwg.mxu0
        %577 = vmatprep.subr.bf16.mxu0 %v418
        %578 = vmatpush1.bf16.msra.mxu0 %v417
        %579 = vmatprep.subr.bf16.mxu0 %v420
        %580 = vmatpush1.bf16.msra.mxu0 %v419
        %581 = vmatprep.subr.bf16.mxu0 %v422
        %582 = vmatpush1.bf16.msra.mxu0 %v421
        %583 = vmatprep.subr.bf16.mxu0 %v424
        %584 = vmatpush1.bf16.msra.mxu0 %v423
        %585 = vmatprep.subr.bf16.mxu0 %v426
        %586 = vmatpush1.bf16.msra.mxu0 %v425
        %587 = vmatprep.subr.bf16.mxu0 %v428
        %588 = vmatpush1.bf16.msra.mxu0 %v427
        %589 = vmatprep.subr.bf16.mxu0 %v430
        %590 = vmatpush1.bf16.msra.mxu0 %v429
        %591 = vmatprep.subr.bf16.mxu0 %v432
        %592 = vmatpush1.bf16.msra.mxu0 %v431
        %593 = vmatprep.subr.bf16.mxu0 %v434
        %594 = vmatpush1.bf16.msra.mxu0 %v433
        %595 = vmatprep.subr.bf16.mxu0 %v436
        %596 = vmatpush1.bf16.msra.mxu0 %v435
        %597 = vmatprep.subr.bf16.mxu0 %v438
        %598 = vmatpush1.bf16.msra.mxu0 %v437
        %599 = vmatprep.subr.bf16.mxu0 %v440
        %600 = vmatpush1.bf16.msra.mxu0 %v439
        %601 = vmatprep.subr.bf16.mxu0 %v442
        %602 = vmatpush1.bf16.msra.mxu0 %v441
        %603 = vmatprep.subr.bf16.mxu0 %v444
        %604 = vmatpush1.bf16.msra.mxu0 %v443
        %605 = vmatprep.subr.bf16.mxu0 %v446
        %606 = vmatpush1.bf16.msra.mxu0 %v445
        %607 = vmatprep.subr.bf16.mxu0 %v448
        %608 = vmatpush1.bf16.msra.mxu0 %v447
        %609 = vmatprep.mubr.bf16.mxu0 %v529
        %610 = vmatmul.mubr.bf16.gmra.mrb[0].mxu0 %v528
        %v611 = vpop.f32.mrb[0].mxu0
        %v612 = vadd.f32 %v571, %v611
        %v613 = vpop.f32.mrb[0].mxu0
        %v614 = vadd.f32 %v573, %v613
        %v615 = vpop.f32.mrb[0].mxu0
        %v616 = vpop.f32.mrb[0].mxu0
        %617 = vdwg.mxu0
        %618 = vmatprep.subr.bf16.mxu0 %v450
        %619 = vmatpush1.bf16.msra.mxu0 %v449
        %620 = vmatprep.subr.bf16.mxu0 %v452
        %621 = vmatpush1.bf16.msra.mxu0 %v451
        %622 = vmatprep.subr.bf16.mxu0 %v454
        %623 = vmatpush1.bf16.msra.mxu0 %v453
        %624 = vmatprep.subr.bf16.mxu0 %v456
        %625 = vmatpush1.bf16.msra.mxu0 %v455
        %626 = vmatprep.subr.bf16.mxu0 %v458
        %627 = vmatpush1.bf16.msra.mxu0 %v457
        %628 = vmatprep.subr.bf16.mxu0 %v460
        %629 = vmatpush1.bf16.msra.mxu0 %v459
        %630 = vmatprep.subr.bf16.mxu0 %v462
        %631 = vmatpush1.bf16.msra.mxu0 %v461
        %632 = vmatprep.subr.bf16.mxu0 %v464
        %633 = vmatpush1.bf16.msra.mxu0 %v463
        %634 = vmatprep.subr.bf16.mxu0 %v466
        %635 = vmatpush1.bf16.msra.mxu0 %v465
        %636 = vmatprep.subr.bf16.mxu0 %v468
        %637 = vmatpush1.bf16.msra.mxu0 %v467
        %638 = vmatprep.subr.bf16.mxu0 %v470
        %639 = vmatpush1.bf16.msra.mxu0 %v469
        %640 = vmatprep.subr.bf16.mxu0 %v472
        %641 = vmatpush1.bf16.msra.mxu0 %v471
        %642 = vmatprep.subr.bf16.mxu0 %v474
        %643 = vmatpush1.bf16.msra.mxu0 %v473
        %644 = vmatprep.subr.bf16.mxu0 %v476
        %645 = vmatpush1.bf16.msra.mxu0 %v475
        %646 = vmatprep.subr.bf16.mxu0 %v478
        %647 = vmatpush1.bf16.msra.mxu0 %v477
        %648 = vmatprep.subr.bf16.mxu0 %v480
        %649 = vmatpush1.bf16.msra.mxu0 %v479
        %650 = vmatprep.mubr.bf16.mxu0 %v527
        %651 = vmatmul.mubr.bf16.gmra.mrb[0].mxu0 %v513
        %v652 = vpop.f32.mrb[0].mxu0
        %v653 = vadd.f32 %v612, %v652
        %v654 = vpop.f32.mrb[0].mxu0
        %v655 = vadd.f32 %v614, %v654
        %v656 = vpop.f32.mrb[0].mxu0
        %v657 = vpop.f32.mrb[0].mxu0
        %658 = vdwg.mxu0
        %v661 = vcombine.low %v653, %v655
        %v663 = vunpack.c.l.s4 1983009808
        %v664 = vunpack.c.0.s8 %v663
        %v665 = vlaneseq
        %v666 = vshrl.u32 %v665, 7
        %v667 = vsub.s32 %v664, %v666
        %v668 = vrot.slane %v661, %v667
        %v670 = vadd.f32 %v333, %v668
        %671 = vst [vmem:[#allocation2] sm:$0xf] %v670
        // Predicated region
        $region49: #{tpu_custom_call.1} parent=35 // pred_check
          %p672 = pneg %p328
        $region50: #{tpu_custom_call.1} parent=35 // pred_check_branch
          %674 = sbr.rel (%p672) target = $region52
        $region51: #{tpu_custom_call.1} parent=35 // pred_region
          %v675 = vld [vmem:[#allocation2] sm:$0xf]
          %v676 = vld [vmem:[%s315] sm:$0x3]
          %v678 = vlaneseq
          %v679 = vshrl.u32 %v678, 7
          %v680 = vsub.s32 0, %v679
          %v681 = vrot.slane %v676, %v680
          %v682 = vlaneseq
          %v683 = vshrl.u32 %v682, 7
          %v684 = vsub.s32 1, %v683
          %v685 = vrot.slane %v676, %v684
          %v686 = vcombine.low %v681, %v685
          %v688 = vunpack.c.l.s4 1983009808
          %v689 = vunpack.c.0.s8 %v688
          %v690 = vlaneseq
          %v691 = vshrl.u32 %v690, 7
          %v692 = vsub.s32 %v689, %v691
          %v693 = vrot.slane %v686, %v692
          %v695 = vmul.f32 %v675, %v693
          %v696 = vld [vmem:[%s319] sm:$0x3]
          %v698 = vlaneseq
          %v699 = vshrl.u32 %v698, 7
          %v700 = vsub.s32 0, %v699
          %v701 = vrot.slane %v696, %v700
          %v702 = vlaneseq
          %v703 = vshrl.u32 %v702, 7
          %v704 = vsub.s32 1, %v703
          %v705 = vrot.slane %v696, %v704
          %v706 = vcombine.low %v701, %v705
          %v708 = vunpack.c.l.s4 1983009808
          %v709 = vunpack.c.0.s8 %v708
          %v710 = vlaneseq
          %v711 = vshrl.u32 %v710, 7
          %v712 = vsub.s32 %v709, %v711
          %v713 = vrot.slane %v706, %v712
          %v715 = vadd.f32 %v695, %v713
          %v717 = vlaneseq
          %v718 = vshrl.u32 %v717, 7
          %v719 = vsub.s32 1, %v718
          %v720 = vrot.slane %v715, %v719
          %v721 = vlaneseq
          %v722 = vshrl.u32 %v721, 7
          %v723 = vsub.s32 3, %v722
          %v724 = vrot.slane %v715, %v723
          %v727 = vlaneseq
          %v728 = vshrl.u32 %v727, 7
          %v729 = vsub.s32 1, %v728
          %v730 = vrot.slane %v720, %v729
          %v731 = vlaneseq
          %v732 = vshrl.u32 %v731, 7
          %v733 = vsub.s32 1, %v732
          %v734 = vrot.slane %v724, %v733
          %v737 = vcombine.low %v730, %v734
          %v739 = vunpack.c.l.s4 1983009808
          %v740 = vunpack.c.0.s8 %v739
          %v741 = vlaneseq
          %v742 = vshrl.u32 %v741, 7
          %v743 = vsub.s32 %v740, %v742
          %v744 = vrot.slane %v737, %v743
          %v746 = vmul.f32 %v715, %v744
          %v749 = vunpack.c.l.s4 1983009808
          %v750 = vunpack.c.0.s8 %v749
          %v751 = vlaneseq
          %v752 = vshrl.u32 %v751, 7
          %v753 = vsub.s32 %v750, %v752
          %v754 = vrot.slane %v746, %v753
          %v755 = vcombine.high %v754, %v754
          %vm758 = vcmask 1041408
          %v759 = vsel %vm758, %v754, 0.0
          %v760 = vsel %vm758, %v755, 0.0
          %v761 = vadd.f32 %v759, %v760
          %762 = vadd.xlane.f32.xlu0 %v761
          %v763 = vpop.xlane.xlu0 %762
          %vm764 = vcmask 1024
          %765 = vst.msk [vmem:[%s323] sm:$0x3] %vm764, %v763
          %v766 = vmul.f32 %v715, %v715
          %v769 = vunpack.c.l.s4 1983009808
          %v770 = vunpack.c.0.s8 %v769
          %v771 = vlaneseq
          %v772 = vshrl.u32 %v771, 7
          %v773 = vsub.s32 %v770, %v772
          %v774 = vrot.slane %v766, %v773
          %v775 = vcombine.high %v774, %v774
          %v778 = vsel %vm758, %v774, 0.0
          %v779 = vsel %vm758, %v775, 0.0
          %v780 = vadd.f32 %v778, %v779
          %781 = vadd.xlane.f32.xlu0 %v780
          %v782 = vpop.xlane.xlu0 %781
          %783 = vst.msk [vmem:[%s327] sm:$0x3] %vm764, %v782
        $region52: #{tpu_custom_call.1} parent=35 // pred_fallthru
          _
        %p784 = scmp.lt.s32.totalorder %s25, 1
        %s785 = scalar_select %p784, %s25, 1
        %s786 = smul.addr %s785, 2
        %s787 = scalar_lea.vmem %s4, %s786
        %p788 = scmp.lt.s32.totalorder %s25, 1
        %s789 = scalar_select %p788, %s25, 1
        %s790 = smul.addr %s789, 2
        %s791 = scalar_lea.vmem %s5, %s790
        // Predicated region
        $region53: #{tpu_custom_call.1} parent=35 // pred_check
          %p792 = pneg %p157
        $region54: #{tpu_custom_call.1} parent=35 // pred_check_branch
          %794 = sbr.rel (%p792) target = $region56
        $region55: #{tpu_custom_call.1} parent=35 // pred_region
          _
        $region56: #{tpu_custom_call.1} parent=35 // pred_fallthru
          _
        // Predicated region
        $region57: #{tpu_custom_call.1} parent=35 // pred_check
          %p795 = pneg %p183
        $region58: #{tpu_custom_call.1} parent=35 // pred_check_branch
          %797 = sbr.rel (%p795) target = $region60
        $region59: #{tpu_custom_call.1} parent=35 // pred_region
          _
        $region60: #{tpu_custom_call.1} parent=35 // pred_fallthru
          _
      $region36: #{tpu_custom_call.1} parent=5 // pred_fallthru
        _
      %p798 = scmp.le.s32.totalorder 2, %s16
      // Predicated region
      $region61: #{tpu_custom_call.1} parent=5 // pred_check
        %p799 = pneg %p798
      $region62: #{tpu_custom_call.1} parent=5 // pred_check_branch
        %801 = sbr.rel (%p799) target = $region64
      $region63: #{tpu_custom_call.1} parent=5 // pred_region
        %s802 = ssub.s32 %s16, 2
        // Predicated region
        $region65: #{tpu_custom_call.1} parent=63 // pred_check
          %p803 = pneg %p163
        $region66: #{tpu_custom_call.1} parent=63 // pred_check_branch
          %805 = sbr.rel (%p803) target = $region68
        $region67: #{tpu_custom_call.1} parent=63 // pred_region
          %p806 = scmp.lt.s32.totalorder %s27, 1
          %s807 = scalar_select %p806, %s27, 1
          %s808 = smul.addr %s807, 2
          %s809 = scalar_lea.vmem %s4, %s808
        $region68: #{tpu_custom_call.1} parent=63 // pred_fallthru
          _
        // Predicated region
        $region69: #{tpu_custom_call.1} parent=63 // pred_check
          %p810 = pneg %p189
        $region70: #{tpu_custom_call.1} parent=63 // pred_check_branch
          %812 = sbr.rel (%p810) target = $region72
        $region71: #{tpu_custom_call.1} parent=63 // pred_region
          %p813 = scmp.lt.s32.totalorder %s27, 1
          %s814 = scalar_select %p813, %s27, 1
          %s815 = smul.addr %s814, 2
          %s816 = scalar_lea.vmem %s5, %s815
        $region72: #{tpu_custom_call.1} parent=63 // pred_fallthru
          _
      $region64: #{tpu_custom_call.1} parent=5 // pred_fallthru
        _
    $region6: #{tpu_custom_call.1} parent=1 // loop_footer
      %s20 = sadd.s32 1, %s16
    $region7: #{tpu_custom_call.1} parent=1 // loop_footer_branch
      %15 = sbr.rel target = $region3
    $region8: #{tpu_custom_call.1} parent=1 // loop_exit
      _
    %817 = vsyncpa [#allocation4], 1
    %s818 = scalar_lea.sflag [#allocation4], 1
    %819 = vsyncpa %s818, 1
    %820 = vsyncpa [#allocation6], 1
    %s821 = scalar_lea.sflag [#allocation6], 1
    %822 = vsyncpa %s821, 1

</llo_original>
